<compile_context>
chip_gen: v5e
topology: v5e:2x2
jax: 0.10.0
libtpu: 0.0.40
codegen_flags: <defaults>
</compile_context>

<pallas_src>
import functools

import jax
import jax.numpy as jnp
from jax import lax
from jax.experimental import pallas as pl
from jax.experimental.pallas import tpu as pltpu

EPS = 1e-8              # nn.CosineSimilarity default eps
_LANE = 128
_MIB = 1024 * 1024


def _cos_sim_kernel(x_ref, y_ref, inv_nx_ref, inv_ny_ref, o_ref, *,
                    inv_temp, mxu_dtype):
    # Norms are precomputed, so the only cross-lane work left is the matmul.
    x = x_ref[...]                                   # (tm, H), input dtype
    y = y_ref[...]                                   # (tn, H), input dtype
    inv_nx = inv_nx_ref[...]                         # (tm, 1), f32
    inv_ny = inv_ny_ref[...]                         # (tn, 1), f32

    # Fold 1/temp into the x row scale; cast to the MXU operand dtype
    # (input dtype, or bf16 when the caller opts in for f32 inputs).
    xn = (x.astype(jnp.float32) * (inv_nx * inv_temp)).astype(mxu_dtype)
    yn = (y.astype(jnp.float32) * inv_ny).astype(mxu_dtype)

    # Contraction on the last dim of BOTH operands (canonical q·kᵀ pattern):
    # no explicit y.T -> no per-step XLU transpose / VMEM relayout.
    dots = lax.dot_general(xn, yn,
                           dimension_numbers=(((1,), (1,)), ((), ())),
                           preferred_element_type=jnp.float32)      # (tm, tn)
    o_ref[...] = dots.astype(o_ref.dtype)


def _vmem_capacity_bytes():
    try:
        cap = getattr(pltpu.get_tpu_info(), "vmem_capacity_bytes", None)
        if cap:
            return int(cap)
    except Exception:
        pass
    return 64 * _MIB   # conservative default: v7x per-TensorCore VMEM


def _block_footprint(tm, tn, h, in_bytes, x_buffers):
    blocks = (x_buffers * tm * h * in_bytes        # x block(s), resident over j
              + 2 * tn * h * in_bytes              # y block, double-buffered
              + 2 * tm * tn * 4                    # f32 output, double-buffered
              + (x_buffers * tm + 2 * tn) * 4)     # inv-norm blocks
    temps = (tm + tn) * h * 4                      # f32 upcast temporaries
    return blocks + temps


def _select_tiles(bxp, byp, h, in_bytes, budget):
    """Pick (tm, tn, x_buffer_count) against a per-generation VMEM budget.

    tm (the resident x tile) is grown as far as the budget allows: per inner
    grid step the streamed bytes are ~tn*H*b so arithmetic intensity is
    ~2*tm/b flop/byte; tm >= 1024 clears v6e's ~650 flop/byte ridge.  tn stays
    in 128..512.  Whenever >=2 grid points are possible we require them so a
    v7x megacore never idles a TensorCore and the prologue DMA stays hidden.
    """
    tm_cands = [t for t in (2048, 1024, 512, 256, 128) if t <= bxp and bxp % t == 0]
    tn_cands = [t for t in (512, 256, 128) if t <= byp and byp % t == 0]
    if not tm_cands:
        tm_cands = [bxp]
    if not tn_cands:
        tn_cands = [byp]

    can_multi = bxp >= 2 * _LANE or byp >= 2 * _LANE
    for tm in tm_cands:
        for tn in tn_cands:
            gm, gn = bxp // tm, byp // tn
            if can_multi and gm * gn < 2:
                continue                     # never collapse to a 1x1 grid
            for x_buffers in (2, 1):
                # Single-buffering x only pays off when it is revisited over j.
                if x_buffers == 1 and gn < 2:
                    continue
                if _block_footprint(tm, tn, h, in_bytes, x_buffers) <= budget:
                    return tm, tn, x_buffers
    # TODO(synk): for H so large that even 128x128 tiles with full H overflow
    # the budget, add a K (hidden) grid axis + f32 VMEM accumulator instead of
    # keeping the whole row resident.
    return tm_cands[-1], tn_cands[-1], 2


def _pad_rows(a, rows):
    if a.shape[0] == rows:
        return a
    return jnp.pad(a, ((0, rows - a.shape[0]), (0, 0)))


def similarity(x, y, temp, *, mxu_bf16=False, out_dtype=jnp.float32):
    """Cosine-similarity matrix divided by temperature.

    x: (Bx, H), y: (By, H)  ->  out: (Bx, By)
    Equivalent to PyTorch: Similarity(temp)(x.unsqueeze(1), y.unsqueeze(0)).

    mxu_bf16: opt-in bf16 MXU operands for f32 inputs (f32 accumulation kept);
    ~3-8x MXU throughput at the cost of ~1e-3 relative logit error.
    """
    assert x.ndim == 2 and y.ndim == 2 and x.shape[1] == y.shape[1]
    assert x.dtype == y.dtype, "x and y must share a dtype"
    Bx, H = x.shape
    By, _ = y.shape

    # Pad batch dims to multiples of 128: lane-dense unmasked output stores,
    # sublane-aligned tiles, and a uniform tiled path for awkward sizes.
    Bxp = -(-Bx // _LANE) * _LANE
    Byp = -(-By // _LANE) * _LANE
    xp = _pad_rows(x, Bxp)
    yp = _pad_rows(y, Byp)

    # Hoist the row-norm reductions out of the tiled kernel: O(B*H) work done
    # once instead of (Bx/tm)*(By/tn) times inside the matmul loop.
    xf = xp.astype(jnp.float32)
    yf = yp.astype(jnp.float32)
    inv_nx = lax.rsqrt(jnp.maximum(jnp.sum(xf * xf, axis=-1, keepdims=True),
                                   EPS * EPS))                       # (Bxp, 1)
    inv_ny = lax.rsqrt(jnp.maximum(jnp.sum(yf * yf, axis=-1, keepdims=True),
                                   EPS * EPS))                       # (Byp, 1)
    # TODO(synk): per-vector eps clamp == PyTorch's product clamp except for
    # near-zero-norm vectors (never occurs with real embeddings).

    in_bytes = x.dtype.itemsize
    vmem_cap = _vmem_capacity_bytes()
    budget = int(vmem_cap * 0.68)          # ~44 MiB on v7x, ~87 MiB on v5e/v6e
    tm, tn, x_buffers = _select_tiles(Bxp, Byp, H, in_bytes, budget)
    grid = (Bxp // tm, Byp // tn)

    footprint = _block_footprint(tm, tn, H, in_bytes, x_buffers)
    vmem_limit = int(min(budget, max(2 * footprint, 32 * _MIB)))

    mxu_dtype = jnp.bfloat16 if (mxu_bf16 and x.dtype == jnp.float32) else x.dtype
    kernel = functools.partial(_cos_sim_kernel,
                               inv_temp=1.0 / float(temp),
                               mxu_dtype=mxu_dtype)

    if x_buffers == 1:
        # x's block index is constant across the inner j axis: single-buffer it
        # to reclaim tm*H*b bytes (matters on v7x's 64 MiB VMEM).
        x_spec = pl.BlockSpec((tm, H), lambda i, j: (i, 0),
                              pipeline_mode=pl.Buffered(1))
    else:
        x_spec = pl.BlockSpec((tm, H), lambda i, j: (i, 0))

    cost = pl.CostEstimate(
        flops=2 * Bxp * Byp * H,
        transcendentals=0,
        bytes_accessed=(Bxp * H * in_bytes               # x read once per i-row
                        + grid[0] * Byp * H * in_bytes   # y streamed per i-row
                        + 4 * Bxp * Byp                  # f32 output
                        + 4 * (Bxp + Byp)),              # inv norms
    )

    out_padded = pl.pallas_call(
        kernel,
        out_shape=jax.ShapeDtypeStruct((Bxp, Byp), out_dtype),
        grid=grid,
        in_specs=[
            x_spec,
            pl.BlockSpec((tn, H), lambda i, j: (j, 0)),
            pl.BlockSpec((tm, 1), lambda i, j: (i, 0)),
            pl.BlockSpec((tn, 1), lambda i, j: (j, 0)),
        ],
        out_specs=pl.BlockSpec((tm, tn), lambda i, j: (i, j)),
        compiler_params=pltpu.CompilerParams(
            dimension_semantics=("parallel", "parallel"),
            vmem_limit_bytes=vmem_limit),
        cost_estimate=cost,
    )(xp, yp, inv_nx, inv_ny)

    if (Bxp, Byp) != (Bx, By):
        return out_padded[:Bx, :By]
    return out_padded


def _reference(x, y, temp):
    # Plain-JAX reference mirroring torch.nn.CosineSimilarity semantics.
    dots = x @ y.T
    nx = jnp.linalg.norm(x, axis=-1, keepdims=True)
    ny = jnp.linalg.norm(y, axis=-1, keepdims=True)
    return dots / jnp.maximum(nx * ny.T, EPS) / temp


if __name__ == "__main__":
    key = jax.random.PRNGKey(0)
    kx, ky = jax.random.split(key)

    B, H = 8, 32          # small demo: batch of 8 sentence embeddings, hidden 32
    temp = 0.05           # SimCSE default temperature

    x = jax.random.normal(kx, (B, H), dtype=jnp.float32)
    y = jax.random.normal(ky, (B, H), dtype=jnp.float32)

    out = similarity(x, y, temp)
    out = jax.block_until_ready(out)

    ref = _reference(x, y, temp)
    assert out.shape == (B, B)
    assert jnp.allclose(out, ref, atol=1e-4, rtol=1e-4), "mismatch vs reference"

    print("KERNEL_OK")
</pallas_src>

<mosaic_0001>
module attributes {stable_mosaic.version = 11 : i64} {
  func.func @_cos_sim_kernel(%arg0: i32, %arg1: i32, %arg2: memref<128x32xf32, #tpu.memory_space<vmem>>, %arg3: memref<128x32xf32, #tpu.memory_space<vmem>>, %arg4: memref<128x1xf32, #tpu.memory_space<vmem>>, %arg5: memref<128x1xf32, #tpu.memory_space<vmem>>, %arg6: memref<128x128xf32, #tpu.memory_space<vmem>>) attributes {dimension_semantics = [#tpu.dimension_semantics<parallel>, #tpu.dimension_semantics<parallel>], iteration_bounds = array<i64: 1, 1>, scalar_prefetch = 0 : i64, scratch_operands = 0 : i64, tpu.core_type = #tpu.core_type<tc>, window_params = [{transform_indices = @transform_0, window_bounds = array<i64: 128, 32>}, {transform_indices = @transform_1, window_bounds = array<i64: 128, 32>}, {transform_indices = @transform_2, window_bounds = array<i64: 128, 1>}, {transform_indices = @transform_3, window_bounds = array<i64: 128, 1>}, {transform_indices = @transform_4, window_bounds = array<i64: 128, 128>}]} {
    %c0 = arith.constant 0 : index
    %c0_0 = arith.constant 0 : index
    %0 = vector.load %arg2[%c0, %c0_0] : memref<128x32xf32, #tpu.memory_space<vmem>>, vector<128x32xf32>
    %c0_1 = arith.constant 0 : index
    %c0_2 = arith.constant 0 : index
    %1 = vector.load %arg3[%c0_1, %c0_2] : memref<128x32xf32, #tpu.memory_space<vmem>>, vector<128x32xf32>
    %c0_3 = arith.constant 0 : index
    %c0_4 = arith.constant 0 : index
    %2 = vector.load %arg4[%c0_3, %c0_4] : memref<128x1xf32, #tpu.memory_space<vmem>>, vector<128x1xf32>
    %c0_5 = arith.constant 0 : index
    %c0_6 = arith.constant 0 : index
    %3 = vector.load %arg5[%c0_5, %c0_6] : memref<128x1xf32, #tpu.memory_space<vmem>>, vector<128x1xf32>
    %cst = arith.constant 2.000000e+01 : f32
    %4 = vector.broadcast %cst : f32 to vector<128x1xf32>
    %5 = arith.mulf %2, %4 : vector<128x1xf32>
    %6 = vector.broadcast %5 : vector<128x1xf32> to vector<128x32xf32>
    %7 = arith.mulf %0, %6 : vector<128x32xf32>
    %8 = vector.broadcast %3 : vector<128x1xf32> to vector<128x32xf32>
    %9 = arith.mulf %1, %8 : vector<128x32xf32>
    %cst_7 = arith.constant dense<0.000000e+00> : vector<128x128xf32>
    %10 = tpu.matmul %7, %9, %cst_7 {dimension_numbers = #tpu.dot_dimension_numbers<[1], [1], [0], [0], [0, 0, 1, 0], [], []>} : vector<128x32xf32>, vector<128x32xf32>, vector<128x128xf32> -> vector<128x128xf32>
    %c0_8 = arith.constant 0 : index
    %c0_9 = arith.constant 0 : index
    %11 = vector.load %arg6[%c0_8, %c0_9] : memref<128x128xf32, #tpu.memory_space<vmem>>, vector<128x128xf32>
    tpu.vector_store %arg6[%c0_8, %c0_9], %10 {strides = array<i32>} : memref<128x128xf32, #tpu.memory_space<vmem>>, vector<128x128xf32>,
    return
  }
  func.func @transform_0(%arg0: i32, %arg1: i32) -> (i32, i32) {
    %c0_i32 = arith.constant 0 : i32
    %c0_i32_0 = arith.constant 0 : i32
    return %arg0, %c0_i32 : i32, i32
  }
  func.func @transform_1(%arg0: i32, %arg1: i32) -> (i32, i32) {
    %c0_i32 = arith.constant 0 : i32
    %c0_i32_0 = arith.constant 0 : i32
    return %arg1, %c0_i32 : i32, i32
  }
  func.func @transform_2(%arg0: i32, %arg1: i32) -> (i32, i32) {
    %c0_i32 = arith.constant 0 : i32
    %c0_i32_0 = arith.constant 0 : i32
    return %arg0, %c0_i32 : i32, i32
  }
  func.func @transform_3(%arg0: i32, %arg1: i32) -> (i32, i32) {
    %c0_i32 = arith.constant 0 : i32
    %c0_i32_0 = arith.constant 0 : i32
    return %arg1, %c0_i32 : i32, i32
  }
  func.func @transform_4(%arg0: i32, %arg1: i32) -> (i32, i32) {
    %c0_i32 = arith.constant 0 : i32
    return %arg0, %arg1 : i32, i32
  }
}

</mosaic_0001>

<llo_original>
// kernel: tpu_custom_call.1
$region0: #{tpu_custom_call.1}
  #allocation0 [shape = 'u32[]', space=smem, size = 0x4, offset = 0x4, fixed_abs, tag = 'smem constant byte address 0x4 - core index']
  #allocation1 [shape = 'u32[72,128]{1,0:T(1,128)}', space=vmem, size = 0x9000, scoped, tag = 'internal scratch']
  %s0 = inlined_call_operand.vmem [shape: f32[128,32], index: 0, kind: input, shape index: {}]
  %s1 = inlined_call_operand.vmem [shape: f32[128,32], index: 1, kind: input, shape index: {}]
  %s2 = inlined_call_operand.vmem [shape: f32[128,1], index: 2, kind: input, shape index: {}]
  %s3 = inlined_call_operand.vmem [shape: f32[128,1], index: 3, kind: input, shape index: {}]
  %s4 = inlined_call_operand.hbm [shape: f32[128,128], index: 4, kind: output, shape index: {}]
  %s5 = sld [smem:[#allocation0]]
  $region26: #{tpu_custom_call.1} parent=0
    _
  %s7 = ssub.s32 1, %s5
  %s8 = scalar_select 0, %s7, %s5
  $region1: #{tpu_custom_call.1} parent=0
    #allocation2 [shape = 'u8[65536]{0}', space=vmem, size = 0x10000, scoped, tag = 'output window, operand 0, single buffered']
    #allocation3 [shape = 's32[1]{0}', space=sflag, size = 0x4, scoped, tag = 'scoped memory for tpu_custom_call.1']
    %9 = vsyncpa [#allocation3], 0
    // Predicated region
    $region2: #{tpu_custom_call.1} parent=1 // pred_check
      _
    $region3: #{tpu_custom_call.1} parent=1 // pred_check_branch
      %11 = sbr.rel (0) target = $region5
    $region4: #{tpu_custom_call.1} parent=1 // pred_region
      _
    $region5: #{tpu_custom_call.1} parent=1 // pred_fallthru
      _
    // Predicated region
    $region6: #{tpu_custom_call.1} parent=1 // pred_check
      _
    $region7: #{tpu_custom_call.1} parent=1 // pred_check_branch
      %13 = sbr.rel (0) target = $region9
    $region8: #{tpu_custom_call.1} parent=1 // pred_region
      _
    $region9: #{tpu_custom_call.1} parent=1 // pred_fallthru
      _
    // Predicated region
    $region10: #{tpu_custom_call.1} parent=1 // pred_check
      _
    $region11: #{tpu_custom_call.1} parent=1 // pred_check_branch
      %15 = sbr.rel (0) target = $region13
    $region12: #{tpu_custom_call.1} parent=1 // pred_region
      _
    $region13: #{tpu_custom_call.1} parent=1 // pred_fallthru
      _
    // Predicated region
    $region14: #{tpu_custom_call.1} parent=1 // pred_check
      _
    $region15: #{tpu_custom_call.1} parent=1 // pred_check_branch
      %17 = sbr.rel (0) target = $region17
    $region16: #{tpu_custom_call.1} parent=1 // pred_region
      _
    $region17: #{tpu_custom_call.1} parent=1 // pred_fallthru
      _
    %v18 = vld [vmem:[%s0] sm:$0xff]
    %v19 = vld [vmem:[%s0 + $0x8] sm:$0xff]
    %v20 = vld [vmem:[%s0 + $0x10] sm:$0xff]
    %v21 = vld [vmem:[%s0 + $0x18] sm:$0xff]
    %v22 = vld [vmem:[%s0 + $0x20] sm:$0xff]
    %v23 = vld [vmem:[%s0 + $0x28] sm:$0xff]
    %v24 = vld [vmem:[%s0 + $0x30] sm:$0xff]
    %v25 = vld [vmem:[%s0 + $0x38] sm:$0xff]
    %v26 = vld [vmem:[%s0 + $0x40] sm:$0xff]
    %v27 = vld [vmem:[%s0 + $0x48] sm:$0xff]
    %v28 = vld [vmem:[%s0 + $0x50] sm:$0xff]
    %v29 = vld [vmem:[%s0 + $0x58] sm:$0xff]
    %v30 = vld [vmem:[%s0 + $0x60] sm:$0xff]
    %v31 = vld [vmem:[%s0 + $0x68] sm:$0xff]
    %v32 = vld [vmem:[%s0 + $0x70] sm:$0xff]
    %v33 = vld [vmem:[%s0 + $0x78] sm:$0xff]
    %v34 = vld [vmem:[%s1] sm:$0xff]
    %v35 = vld [vmem:[%s1 + $0x8] sm:$0xff]
    %v36 = vld [vmem:[%s1 + $0x10] sm:$0xff]
    %v37 = vld [vmem:[%s1 + $0x18] sm:$0xff]
    %v38 = vld [vmem:[%s1 + $0x20] sm:$0xff]
    %v39 = vld [vmem:[%s1 + $0x28] sm:$0xff]
    %v40 = vld [vmem:[%s1 + $0x30] sm:$0xff]
    %v41 = vld [vmem:[%s1 + $0x38] sm:$0xff]
    %v42 = vld [vmem:[%s1 + $0x40] sm:$0xff]
    %v43 = vld [vmem:[%s1 + $0x48] sm:$0xff]
    %v44 = vld [vmem:[%s1 + $0x50] sm:$0xff]
    %v45 = vld [vmem:[%s1 + $0x58] sm:$0xff]
    %v46 = vld [vmem:[%s1 + $0x60] sm:$0xff]
    %v47 = vld [vmem:[%s1 + $0x68] sm:$0xff]
    %v48 = vld [vmem:[%s1 + $0x70] sm:$0xff]
    %v49 = vld [vmem:[%s1 + $0x78] sm:$0xff]
    %v50 = vld [vmem:[%s2] sm:$0xff]
    %v51 = vld [vmem:[%s2 + $0x8] sm:$0xff]
    %v52 = vld [vmem:[%s2 + $0x10] sm:$0xff]
    %v53 = vld [vmem:[%s2 + $0x18] sm:$0xff]
    %v54 = vld [vmem:[%s2 + $0x20] sm:$0xff]
    %v55 = vld [vmem:[%s2 + $0x28] sm:$0xff]
    %v56 = vld [vmem:[%s2 + $0x30] sm:$0xff]
    %v57 = vld [vmem:[%s2 + $0x38] sm:$0xff]
    %v58 = vld [vmem:[%s2 + $0x40] sm:$0xff]
    %v59 = vld [vmem:[%s2 + $0x48] sm:$0xff]
    %v60 = vld [vmem:[%s2 + $0x50] sm:$0xff]
    %v61 = vld [vmem:[%s2 + $0x58] sm:$0xff]
    %v62 = vld [vmem:[%s2 + $0x60] sm:$0xff]
    %v63 = vld [vmem:[%s2 + $0x68] sm:$0xff]
    %v64 = vld [vmem:[%s2 + $0x70] sm:$0xff]
    %v65 = vld [vmem:[%s2 + $0x78] sm:$0xff]
    %v66 = vld [vmem:[%s3] sm:$0xff]
    %v67 = vld [vmem:[%s3 + $0x8] sm:$0xff]
    %v68 = vld [vmem:[%s3 + $0x10] sm:$0xff]
    %v69 = vld [vmem:[%s3 + $0x18] sm:$0xff]
    %v70 = vld [vmem:[%s3 + $0x20] sm:$0xff]
    %v71 = vld [vmem:[%s3 + $0x28] sm:$0xff]
    %v72 = vld [vmem:[%s3 + $0x30] sm:$0xff]
    %v73 = vld [vmem:[%s3 + $0x38] sm:$0xff]
    %v74 = vld [vmem:[%s3 + $0x40] sm:$0xff]
    %v75 = vld [vmem:[%s3 + $0x48] sm:$0xff]
    %v76 = vld [vmem:[%s3 + $0x50] sm:$0xff]
    %v77 = vld [vmem:[%s3 + $0x58] sm:$0xff]
    %v78 = vld [vmem:[%s3 + $0x60] sm:$0xff]
    %v79 = vld [vmem:[%s3 + $0x68] sm:$0xff]
    %v80 = vld [vmem:[%s3 + $0x70] sm:$0xff]
    %v81 = vld [vmem:[%s3 + $0x78] sm:$0xff]
    %v82 = vmul.f32 %v50, 20.0
    %v83 = vmul.f32 %v51, 20.0
    %v84 = vmul.f32 %v52, 20.0
    %v85 = vmul.f32 %v53, 20.0
    %v86 = vmul.f32 %v54, 20.0
    %v87 = vmul.f32 %v55, 20.0
    %v88 = vmul.f32 %v56, 20.0
    %v89 = vmul.f32 %v57, 20.0
    %v90 = vmul.f32 %v58, 20.0
    %v91 = vmul.f32 %v59, 20.0
    %v92 = vmul.f32 %v60, 20.0
    %v93 = vmul.f32 %v61, 20.0
    %v94 = vmul.f32 %v62, 20.0
    %v95 = vmul.f32 %v63, 20.0
    %v96 = vmul.f32 %v64, 20.0
    %v97 = vmul.f32 %v65, 20.0
    %99 = vset.pattern.permute.xlu0 0
    %100 = vperm.xlu0 %99, %v82
    %v101 = vpop.permute.xlu0 %100
    %104 = vset.pattern.permute.xlu0 0
    %105 = vperm.xlu0 %104, %v83
    %v106 = vpop.permute.xlu0 %105
    %109 = vset.pattern.permute.xlu0 0
    %110 = vperm.xlu0 %109, %v84
    %v111 = vpop.permute.xlu0 %110
    %114 = vset.pattern.permute.xlu0 0
    %115 = vperm.xlu0 %114, %v85
    %v116 = vpop.permute.xlu0 %115
    %119 = vset.pattern.permute.xlu0 0
    %120 = vperm.xlu0 %119, %v86
    %v121 = vpop.permute.xlu0 %120
    %124 = vset.pattern.permute.xlu0 0
    %125 = vperm.xlu0 %124, %v87
    %v126 = vpop.permute.xlu0 %125
    %129 = vset.pattern.permute.xlu0 0
    %130 = vperm.xlu0 %129, %v88
    %v131 = vpop.permute.xlu0 %130
    %134 = vset.pattern.permute.xlu0 0
    %135 = vperm.xlu0 %134, %v89
    %v136 = vpop.permute.xlu0 %135
    %139 = vset.pattern.permute.xlu0 0
    %140 = vperm.xlu0 %139, %v90
    %v141 = vpop.permute.xlu0 %140
    %144 = vset.pattern.permute.xlu0 0
    %145 = vperm.xlu0 %144, %v91
    %v146 = vpop.permute.xlu0 %145
    %149 = vset.pattern.permute.xlu0 0
    %150 = vperm.xlu0 %149, %v92
    %v151 = vpop.permute.xlu0 %150
    %154 = vset.pattern.permute.xlu0 0
    %155 = vperm.xlu0 %154, %v93
    %v156 = vpop.permute.xlu0 %155
    %159 = vset.pattern.permute.xlu0 0
    %160 = vperm.xlu0 %159, %v94
    %v161 = vpop.permute.xlu0 %160
    %164 = vset.pattern.permute.xlu0 0
    %165 = vperm.xlu0 %164, %v95
    %v166 = vpop.permute.xlu0 %165
    %169 = vset.pattern.permute.xlu0 0
    %170 = vperm.xlu0 %169, %v96
    %v171 = vpop.permute.xlu0 %170
    %174 = vset.pattern.permute.xlu0 0
    %175 = vperm.xlu0 %174, %v97
    %v176 = vpop.permute.xlu0 %175
    %v178 = vmul.f32 %v18, %v101
    %v179 = vmul.f32 %v19, %v106
    %v180 = vmul.f32 %v20, %v111
    %v181 = vmul.f32 %v21, %v116
    %v182 = vmul.f32 %v22, %v121
    %v183 = vmul.f32 %v23, %v126
    %v184 = vmul.f32 %v24, %v131
    %v185 = vmul.f32 %v25, %v136
    %v186 = vmul.f32 %v26, %v141
    %v187 = vmul.f32 %v27, %v146
    %v188 = vmul.f32 %v28, %v151
    %v189 = vmul.f32 %v29, %v156
    %v190 = vmul.f32 %v30, %v161
    %v191 = vmul.f32 %v31, %v166
    %v192 = vmul.f32 %v32, %v171
    %v193 = vmul.f32 %v33, %v176
    %195 = vset.pattern.permute.xlu0 0
    %196 = vperm.xlu0 %195, %v66
    %v197 = vpop.permute.xlu0 %196
    %200 = vset.pattern.permute.xlu0 0
    %201 = vperm.xlu0 %200, %v67
    %v202 = vpop.permute.xlu0 %201
    %205 = vset.pattern.permute.xlu0 0
    %206 = vperm.xlu0 %205, %v68
    %v207 = vpop.permute.xlu0 %206
    %210 = vset.pattern.permute.xlu0 0
    %211 = vperm.xlu0 %210, %v69
    %v212 = vpop.permute.xlu0 %211
    %215 = vset.pattern.permute.xlu0 0
    %216 = vperm.xlu0 %215, %v70
    %v217 = vpop.permute.xlu0 %216
    %220 = vset.pattern.permute.xlu0 0
    %221 = vperm.xlu0 %220, %v71
    %v222 = vpop.permute.xlu0 %221
    %225 = vset.pattern.permute.xlu0 0
    %226 = vperm.xlu0 %225, %v72
    %v227 = vpop.permute.xlu0 %226
    %230 = vset.pattern.permute.xlu0 0
    %231 = vperm.xlu0 %230, %v73
    %v232 = vpop.permute.xlu0 %231
    %235 = vset.pattern.permute.xlu0 0
    %236 = vperm.xlu0 %235, %v74
    %v237 = vpop.permute.xlu0 %236
    %240 = vset.pattern.permute.xlu0 0
    %241 = vperm.xlu0 %240, %v75
    %v242 = vpop.permute.xlu0 %241
    %245 = vset.pattern.permute.xlu0 0
    %246 = vperm.xlu0 %245, %v76
    %v247 = vpop.permute.xlu0 %246
    %250 = vset.pattern.permute.xlu0 0
    %251 = vperm.xlu0 %250, %v77
    %v252 = vpop.permute.xlu0 %251
    %255 = vset.pattern.permute.xlu0 0
    %256 = vperm.xlu0 %255, %v78
    %v257 = vpop.permute.xlu0 %256
    %260 = vset.pattern.permute.xlu0 0
    %261 = vperm.xlu0 %260, %v79
    %v262 = vpop.permute.xlu0 %261
    %265 = vset.pattern.permute.xlu0 0
    %266 = vperm.xlu0 %265, %v80
    %v267 = vpop.permute.xlu0 %266
    %270 = vset.pattern.permute.xlu0 0
    %271 = vperm.xlu0 %270, %v81
    %v272 = vpop.permute.xlu0 %271
    %v274 = vmul.f32 %v34, %v197
    %v275 = vmul.f32 %v35, %v202
    %v276 = vmul.f32 %v36, %v207
    %v277 = vmul.f32 %v37, %v212
    %v278 = vmul.f32 %v38, %v217
    %v279 = vmul.f32 %v39, %v222
    %v280 = vmul.f32 %v40, %v227
    %v281 = vmul.f32 %v41, %v232
    %v282 = vmul.f32 %v42, %v237
    %v283 = vmul.f32 %v43, %v242
    %v284 = vmul.f32 %v44, %v247
    %v285 = vmul.f32 %v45, %v252
    %v286 = vmul.f32 %v46, %v257
    %v287 = vmul.f32 %v47, %v262
    %v288 = vmul.f32 %v48, %v267
    %v289 = vmul.f32 %v49, %v272
    %vm290 = vcmask 261120
    %v292 = vsel %vm290, %v178, 0
    %v295 = vsel %vm290, %v179, 0
    %v298 = vsel %vm290, %v180, 0
    %v301 = vsel %vm290, %v181, 0
    %v304 = vsel %vm290, %v182, 0
    %v307 = vsel %vm290, %v183, 0
    %v310 = vsel %vm290, %v184, 0
    %v313 = vsel %vm290, %v185, 0
    %v316 = vsel %vm290, %v186, 0
    %v319 = vsel %vm290, %v187, 0
    %v322 = vsel %vm290, %v188, 0
    %v325 = vsel %vm290, %v189, 0
    %v328 = vsel %vm290, %v190, 0
    %v331 = vsel %vm290, %v191, 0
    %v334 = vsel %vm290, %v192, 0
    %v337 = vsel %vm290, %v193, 0
    %v340 = vsel %vm290, %v274, 0
    %v343 = vsel %vm290, %v275, 0
    %v346 = vsel %vm290, %v276, 0
    %v349 = vsel %vm290, %v277, 0
    %v352 = vsel %vm290, %v278, 0
    %v355 = vsel %vm290, %v279, 0
    %v358 = vsel %vm290, %v280, 0
    %v361 = vsel %vm290, %v281, 0
    %v364 = vsel %vm290, %v282, 0
    %v367 = vsel %vm290, %v283, 0
    %v370 = vsel %vm290, %v284, 0
    %v373 = vsel %vm290, %v285, 0
    %v376 = vsel %vm290, %v286, 0
    %v379 = vsel %vm290, %v287, 0
    %v382 = vsel %vm290, %v288, 0
    %v385 = vsel %vm290, %v289, 0
    %387 = vmatpush.xpose.msra.mxu0 %v385
    %388 = vmatpush.xpose.msra.mxu0 %v382
    %389 = vmatpush.xpose.msra.mxu0 %v379
    %390 = vmatpush.xpose.msra.mxu0 %v376
    %391 = vmatpush.xpose.msra.mxu0 %v373
    %392 = vmatpush.xpose.msra.mxu0 %v370
    %393 = vmatpush.xpose.msra.mxu0 %v367
    %394 = vmatpush.xpose.msra.mxu0 %v364
    %395 = vmatpush.xpose.msra.mxu0 %v361
    %396 = vmatpush.xpose.msra.mxu0 %v358
    %397 = vmatpush.xpose.msra.mxu0 %v355
    %398 = vmatpush.xpose.msra.mxu0 %v352
    %399 = vmatpush.xpose.msra.mxu0 %v349
    %400 = vmatpush.xpose.msra.mxu0 %v346
    %401 = vmatpush.xpose.msra.mxu0 %v343
    %402 = vmatpush.xpose.msra.mxu0 %v340
    %403 = vmatmul.f32.gmra.mxu0 %v292
    %v404 = vpop.f32.mrf.mxu0
    %v405 = vadd.f32 0.0, %v404
    %406 = vmatmul.f32.gmra.mxu0 %v295
    %v407 = vpop.f32.mrf.mxu0
    %v408 = vadd.f32 0.0, %v407
    %409 = vmatmul.f32.gmra.mxu0 %v298
    %v410 = vpop.f32.mrf.mxu0
    %v411 = vadd.f32 0.0, %v410
    %412 = vmatmul.f32.gmra.mxu0 %v301
    %v413 = vpop.f32.mrf.mxu0
    %v414 = vadd.f32 0.0, %v413
    %415 = vmatmul.f32.gmra.mxu0 %v304
    %v416 = vpop.f32.mrf.mxu0
    %v417 = vadd.f32 0.0, %v416
    %418 = vmatmul.f32.gmra.mxu0 %v307
    %v419 = vpop.f32.mrf.mxu0
    %v420 = vadd.f32 0.0, %v419
    %421 = vmatmul.f32.gmra.mxu0 %v310
    %v422 = vpop.f32.mrf.mxu0
    %v423 = vadd.f32 0.0, %v422
    %424 = vmatmul.f32.gmra.mxu0 %v313
    %v425 = vpop.f32.mrf.mxu0
    %v426 = vadd.f32 0.0, %v425
    %427 = vmatmul.f32.gmra.mxu0 %v316
    %v428 = vpop.f32.mrf.mxu0
    %v429 = vadd.f32 0.0, %v428
    %430 = vmatmul.f32.gmra.mxu0 %v319
    %v431 = vpop.f32.mrf.mxu0
    %v432 = vadd.f32 0.0, %v431
    %433 = vmatmul.f32.gmra.mxu0 %v322
    %v434 = vpop.f32.mrf.mxu0
    %v435 = vadd.f32 0.0, %v434
    %436 = vmatmul.f32.gmra.mxu0 %v325
    %v437 = vpop.f32.mrf.mxu0
    %v438 = vadd.f32 0.0, %v437
    %439 = vmatmul.f32.gmra.mxu0 %v328
    %v440 = vpop.f32.mrf.mxu0
    %v441 = vadd.f32 0.0, %v440
    %442 = vmatmul.f32.gmra.mxu0 %v331
    %v443 = vpop.f32.mrf.mxu0
    %v444 = vadd.f32 0.0, %v443
    %445 = vmatmul.f32.gmra.mxu0 %v334
    %v446 = vpop.f32.mrf.mxu0
    %v447 = vadd.f32 0.0, %v446
    %448 = vmatmul.f32.gmra.mxu0 %v337
    %v449 = vpop.f32.mrf.mxu0
    %v450 = vadd.f32 0.0, %v449
    %451 = vdwg.mxu0
    %452 = vst [vmem:[#allocation2] sm:$0xff] %v405
    %453 = vst [vmem:[#allocation2 + $0x8] sm:$0xff] %v408
    %454 = vst [vmem:[#allocation2 + $0x10] sm:$0xff] %v411
    %455 = vst [vmem:[#allocation2 + $0x18] sm:$0xff] %v414
    %456 = vst [vmem:[#allocation2 + $0x20] sm:$0xff] %v417
    %457 = vst [vmem:[#allocation2 + $0x28] sm:$0xff] %v420
    %458 = vst [vmem:[#allocation2 + $0x30] sm:$0xff] %v423
    %459 = vst [vmem:[#allocation2 + $0x38] sm:$0xff] %v426
    %460 = vst [vmem:[#allocation2 + $0x40] sm:$0xff] %v429
    %461 = vst [vmem:[#allocation2 + $0x48] sm:$0xff] %v432
    %462 = vst [vmem:[#allocation2 + $0x50] sm:$0xff] %v435
    %463 = vst [vmem:[#allocation2 + $0x58] sm:$0xff] %v438
    %464 = vst [vmem:[#allocation2 + $0x60] sm:$0xff] %v441
    %465 = vst [vmem:[#allocation2 + $0x68] sm:$0xff] %v444
    %466 = vst [vmem:[#allocation2 + $0x70] sm:$0xff] %v447
    %467 = vst [vmem:[#allocation2 + $0x78] sm:$0xff] %v450
    // Predicated region
    $region18: #{tpu_custom_call.1} parent=1 // pred_check
      _
    $region19: #{tpu_custom_call.1} parent=1 // pred_check_branch
      %469 = sbr.rel (0) target = $region21
    $region20: #{tpu_custom_call.1} parent=1 // pred_region
      %471 = vsyncadd [#allocation3], 0
      %s472 = sshll.u32 [#allocation2], 4
      %s473 = int_to_ptr.vmem [resolvable:$true] %s472
      %s474 = sshll.u32 %s4, 4
      %s475 = int_to_ptr.hbm [resolvable:$true] %s474
      %480 = dma.vmem_to_hbm [thread:$0]  %s473, 2048, %s475, [#allocation3], 128, 128, 8
    $region21: #{tpu_custom_call.1} parent=1 // pred_fallthru
      _
    // Predicated region
    $region22: #{tpu_custom_call.1} parent=1 // pred_check
      _
    $region23: #{tpu_custom_call.1} parent=1 // pred_check_branch
      %482 = sbr.rel (0) target = $region25
    $region24: #{tpu_custom_call.1} parent=1 // pred_region
      %484 = dma.done [#allocation3], 2048
    $region25: #{tpu_custom_call.1} parent=1 // pred_fallthru
      _
    %485 = vsyncpa [#allocation3], 1

</llo_original>
